<compile_context>
chip_gen: v5e
topology: v5e:2x2
jax: 0.10.0
libtpu: 0.0.40
codegen_flags: <defaults>
</compile_context>

<pallas_src>
import jax
import jax.numpy as jnp
from jax.experimental import pallas as pl
from jax.experimental.pallas import tpu as pltpu


def _attn_kernel(keyf_ref, decb_ref, amask_ref, imask_ref, val_ref,
                 w1k_ref, w2_ref, b2_ref, scores_ref, ctx_ref):
    TB, S, V = val_ref.shape
    D = w1k_ref.shape[1]

    # ---- Linear1 (key part): one (TB*S, KE) @ (KE, D) MXU matmul ----------
    h = jnp.dot(keyf_ref[...], w1k_ref[...],
                preferred_element_type=jnp.float32)               # (TB*S, D)
    # add precomputed decoder projection (+ b1) per batch row, then tanh (EUP)
    h = jnp.tanh(h.reshape(TB, S, D) + decb_ref[...].reshape(TB, 1, D))

    # ---- Linear2 as VPU multiply + lane reduce; b2 added from (1,1) block --
    energy = jnp.sum(h * w2_ref[...].reshape(1, 1, D), axis=-1)   # (TB, S)
    energy = energy + b2_ref[...]                                 # broadcast (1,1)

    # ---- masked softmax over the sequence axis (lane-major) ---------------
    e = energy + amask_ref[...]
    e = e - jnp.max(e, axis=-1, keepdims=True)
    p = jnp.exp(e)
    p = p / jnp.sum(p, axis=-1, keepdims=True)
    scores = p * imask_ref[...]                                   # (TB, S)
    scores_ref[...] = scores.astype(scores_ref.dtype)

    # ---- context: VPU broadcast-multiply + sublane reduce (no 1-row MXU) --
    ctx = jnp.sum(scores[:, :, None] * val_ref[...], axis=1)      # (TB, V)
    ctx_ref[...] = ctx.astype(ctx_ref.dtype)


def _cdiv(a, b):
    return -(-a // b)


def _pick_batch_block(n, s, ke, v, d, *, target_rows=4096,
                      vmem_budget_bytes=36 * 1024 * 1024):
    """Pick the per-step batch block TB and the padded batch size N_pad.

    Constraints / goals:
      * TB == N (whole batch, always tiling-legal) or TB % 8 == 0, so every
        (TB, ...) block obeys the (8,128) sublane rule.
      * double-buffered per-step bytes stay under `vmem_budget_bytes`
        (sized for v7x's 64 MiB VMEM; v5e/v6e have more headroom).
      * TB*S near `target_rows` so each step moves MBs, not KBs.
      * keep >= 2 grid steps when the batch allows it (v7x has 2 TensorCores).
    """
    # f32 bytes streamed per batch row per step, x2 for default double buffer
    per_row = 2 * 4 * (s * (ke + v)      # key block + value block
                       + d               # decoder projection (+ b1)
                       + 3 * s           # amask, imask, scores out
                       + v)              # context out
    tb = min(max(1, vmem_budget_bytes // per_row),
             max(1, target_rows // max(s, 1)),
             n)
    if n >= 16:                          # leave work for both v7x cores
        tb = min(tb, _cdiv(n, 2))
    if tb >= n:
        return n, n                      # whole batch in one (legal, small) block
    g = _cdiv(n, max(tb, 1))             # number of grid steps
    tb = _cdiv(_cdiv(n, g), 8) * 8       # balance steps, round up to x8
    n_pad = g * tb
    return tb, n_pad


def attention_forward(key_states, value_states, decoder_state,
                      attention_mask, input_mask, params):
    N, S, KE = key_states.shape          # KE == 2 * encoder_hidden_size
    V = value_states.shape[-1]
    D = decoder_state.shape[-1]          # decoder_hidden_size

    w1, b1, w2, b2 = params["w1"], params["b1"], params["w2"], params["b2"]

    # Split Linear1:  cat([k, d]) @ W1.T  ==  k @ W1k.T + d @ W1d.T
    w1k = jnp.transpose(w1[:, :KE]).astype(jnp.float32)            # (KE, D)
    # Decoder projection + b1 precomputed once in XLA (tiny (N,D)@(D,D)).
    dec_bias = (decoder_state @ jnp.transpose(w1[:, KE:]) + b1).astype(jnp.float32)
    w2row = w2.reshape(1, D).astype(jnp.float32)                   # (1, D)
    b2s = b2.reshape(1, 1).astype(jnp.float32)                     # (1, 1)

    # Masks passed straight through (free reshapes, no extra HBM pass).
    amask = attention_mask.reshape(N, S).astype(jnp.float32)
    imask = input_mask.reshape(N, S).astype(jnp.float32)
    key_f32 = key_states.astype(jnp.float32)
    val_f32 = value_states.astype(jnp.float32)

    TB, N_pad = _pick_batch_block(N, S, KE, V, D)
    if N_pad != N:
        pad = N_pad - N
        key_f32 = jnp.pad(key_f32, ((0, pad), (0, 0), (0, 0)))
        val_f32 = jnp.pad(val_f32, ((0, pad), (0, 0), (0, 0)))
        dec_bias = jnp.pad(dec_bias, ((0, pad), (0, 0)))
        amask = jnp.pad(amask, ((0, pad), (0, 0)))
        imask = jnp.pad(imask, ((0, pad), (0, 0)))

    key_flat = key_f32.reshape(N_pad * S, KE)
    grid = (N_pad // TB,)

    scores2d, ctx2d = pl.pallas_call(
        _attn_kernel,
        out_shape=(jax.ShapeDtypeStruct((N_pad, S), jnp.float32),
                   jax.ShapeDtypeStruct((N_pad, V), jnp.float32)),
        grid_spec=pltpu.PrefetchScalarGridSpec(
            num_scalar_prefetch=0,
            grid=grid,
            in_specs=[
                pl.BlockSpec((TB * S, KE), lambda i: (i, 0)),      # key (flattened)
                pl.BlockSpec((TB, D),      lambda i: (i, 0)),      # dec proj + b1
                pl.BlockSpec((TB, S),      lambda i: (i, 0)),      # attention_mask
                pl.BlockSpec((TB, S),      lambda i: (i, 0)),      # input_mask
                pl.BlockSpec((TB, S, V),   lambda i: (i, 0, 0)),   # value_states
                pl.BlockSpec((KE, D),      lambda i: (0, 0)),      # W1 key part (T)
                pl.BlockSpec((1, D),       lambda i: (0, 0)),      # W2 row
                pl.BlockSpec((1, 1),       lambda i: (0, 0)),      # b2 scalar
            ],
            out_specs=[
                pl.BlockSpec((TB, S), lambda i: (i, 0)),           # scores (lane-major)
                pl.BlockSpec((TB, V), lambda i: (i, 0)),           # context (2-D, dense)
            ],
        ),
        compiler_params=pltpu.CompilerParams(
            dimension_semantics=("parallel",),
            vmem_limit_bytes=48 * 1024 * 1024),
    )(key_flat, dec_bias, amask, imask, val_f32, w1k, w2row, b2s)

    attention_scores = scores2d[:N].reshape(N, S, 1).astype(key_states.dtype)
    context_vector = ctx2d[:N].astype(key_states.dtype)
    return attention_scores, context_vector, key_states


if __name__ == "__main__":
    # config implied by the module
    E, D = 16, 32          # encoder_hidden_size, decoder_hidden_size
    N, S = 2, 8            # batch, sequence length
    KE = 2 * E             # key / value feature width

    root = jax.random.PRNGKey(0)
    ks = jax.random.split(root, 8)

    key_states = jax.random.normal(ks[0], (N, S, KE), jnp.float32)
    value_states = jax.random.normal(ks[1], (N, S, KE), jnp.float32)
    decoder_state = jax.random.normal(ks[2], (N, D), jnp.float32)

    keep = jax.random.bernoulli(ks[3], 0.8, (N, S, 1))
    attention_mask = jnp.where(keep, 0.0, -1e9).astype(jnp.float32)   # additive mask
    input_mask = keep[..., 0].astype(jnp.float32)                     # (N, S)

    fan_in1 = KE + D
    params = dict(
        w1=jax.random.normal(ks[4], (D, fan_in1), jnp.float32) / jnp.sqrt(fan_in1),
        b1=jax.random.normal(ks[5], (D,), jnp.float32) * 0.01,
        w2=jax.random.normal(ks[6], (1, D), jnp.float32) / jnp.sqrt(D),
        b2=jax.random.normal(ks[7], (1,), jnp.float32) * 0.01,
    )

    scores, ctx, key_out = attention_forward(
        key_states, value_states, decoder_state, attention_mask, input_mask, params)
    jax.block_until_ready((scores, ctx, key_out))

    # mirrors the module's `assert (attention_scores <= 1.0).all()`
    assert bool(jnp.all(scores <= 1.0 + 1e-6))

    # plain-JAX reference for correctness
    dec_rep = jnp.repeat(decoder_state[:, None, :], S, axis=1)
    x = jnp.concatenate([key_states, dec_rep], axis=-1)
    h = jnp.tanh(x @ params["w1"].T + params["b1"])
    energy = h @ params["w2"].T + params["b2"]
    ref_scores = jax.nn.softmax(energy + attention_mask, axis=1) * input_mask[..., None]
    ref_ctx = jnp.sum(ref_scores * value_states, axis=1)

    assert jnp.allclose(scores, ref_scores, atol=1e-5), "scores mismatch"
    assert jnp.allclose(ctx, ref_ctx, atol=1e-5), "context mismatch"
    assert jnp.array_equal(key_out, key_states)

    print("KERNEL_OK")
</pallas_src>

<mosaic_0001>
module attributes {stable_mosaic.version = 11 : i64} {
  func.func @_attn_kernel(%arg0: i32, %arg1: memref<16x32xf32, #tpu.memory_space<vmem>>, %arg2: memref<2x32xf32, #tpu.memory_space<vmem>>, %arg3: memref<2x8xf32, #tpu.memory_space<vmem>>, %arg4: memref<2x8xf32, #tpu.memory_space<vmem>>, %arg5: memref<2x8x32xf32, #tpu.memory_space<vmem>>, %arg6: memref<32x32xf32, #tpu.memory_space<vmem>>, %arg7: memref<1x32xf32, #tpu.memory_space<vmem>>, %arg8: memref<1x1xf32, #tpu.memory_space<vmem>>, %arg9: memref<2x8xf32, #tpu.memory_space<vmem>>, %arg10: memref<2x32xf32, #tpu.memory_space<vmem>>) attributes {dimension_semantics = [#tpu.dimension_semantics<parallel>], iteration_bounds = array<i64: 1>, scalar_prefetch = 0 : i64, scratch_operands = 0 : i64, tpu.core_type = #tpu.core_type<tc>, window_params = [{transform_indices = @transform_0, window_bounds = array<i64: 16, 32>}, {transform_indices = @transform_1, window_bounds = array<i64: 2, 32>}, {transform_indices = @transform_2, window_bounds = array<i64: 2, 8>}, {transform_indices = @transform_3, window_bounds = array<i64: 2, 8>}, {transform_indices = @transform_4, window_bounds = array<i64: 2, 8, 32>}, {pipeline_mode = #tpu.pipeline_mode<synchronous>, transform_indices = @transform_5, window_bounds = array<i64: 32, 32>}, {pipeline_mode = #tpu.pipeline_mode<synchronous>, transform_indices = @transform_6, window_bounds = array<i64: 1, 32>}, {pipeline_mode = #tpu.pipeline_mode<synchronous>, transform_indices = @transform_7, window_bounds = array<i64: 1, 1>}, {transform_indices = @transform_8, window_bounds = array<i64: 2, 8>}, {transform_indices = @transform_9, window_bounds = array<i64: 2, 32>}]} {
    %c0 = arith.constant 0 : index
    %c0_0 = arith.constant 0 : index
    %0 = vector.load %arg1[%c0, %c0_0] : memref<16x32xf32, #tpu.memory_space<vmem>>, vector<16x32xf32>
    %c0_1 = arith.constant 0 : index
    %c0_2 = arith.constant 0 : index
    %1 = vector.load %arg6[%c0_1, %c0_2] : memref<32x32xf32, #tpu.memory_space<vmem>>, vector<32x32xf32>
    %cst = arith.constant dense<0.000000e+00> : vector<16x32xf32>
    %2 = tpu.matmul %0, %1, %cst {dimension_numbers = #tpu.dot_dimension_numbers<[1], [0], [0], [1], [0, 0, 1, 1], [], []>} : vector<16x32xf32>, vector<32x32xf32>, vector<16x32xf32> -> vector<16x32xf32>
    %3 = vector.shape_cast %2 : vector<16x32xf32> to vector<2x8x32xf32>
    %c0_3 = arith.constant 0 : index
    %c0_4 = arith.constant 0 : index
    %4 = vector.load %arg2[%c0_3, %c0_4] : memref<2x32xf32, #tpu.memory_space<vmem>>, vector<2x32xf32>
    %5 = vector.shape_cast %4 : vector<2x32xf32> to vector<2x1x32xf32>
    %6 = vector.broadcast %5 : vector<2x1x32xf32> to vector<2x8x32xf32>
    %7 = arith.addf %3, %6 : vector<2x8x32xf32>
    %8 = math.tanh %7 : vector<2x8x32xf32>
    %c0_5 = arith.constant 0 : index
    %c0_6 = arith.constant 0 : index
    %9 = vector.load %arg7[%c0_5, %c0_6] : memref<1x32xf32, #tpu.memory_space<vmem>>, vector<1x32xf32>
    %10 = vector.shape_cast %9 : vector<1x32xf32> to vector<1x1x32xf32>
    %11 = vector.broadcast %10 : vector<1x1x32xf32> to vector<2x8x32xf32>
    %12 = arith.mulf %8, %11 : vector<2x8x32xf32>
    %cst_7 = arith.constant dense<0.000000e+00> : vector<2x8xf32>
    %13 = vector.multi_reduction <add>, %12, %cst_7 [2] : vector<2x8x32xf32> to vector<2x8xf32>
    %c0_8 = arith.constant 0 : index
    %c0_9 = arith.constant 0 : index
    %14 = vector.load %arg8[%c0_8, %c0_9] : memref<1x1xf32, #tpu.memory_space<vmem>>, vector<1x1xf32>
    %15 = vector.broadcast %14 : vector<1x1xf32> to vector<2x8xf32>
    %16 = arith.addf %13, %15 : vector<2x8xf32>
    %c0_10 = arith.constant 0 : index
    %c0_11 = arith.constant 0 : index
    %17 = vector.load %arg3[%c0_10, %c0_11] : memref<2x8xf32, #tpu.memory_space<vmem>>, vector<2x8xf32>
    %18 = arith.addf %16, %17 : vector<2x8xf32>
    %cst_12 = arith.constant dense<0xFF800000> : vector<2xf32>
    %19 = vector.multi_reduction <maximumf>, %18, %cst_12 [1] : vector<2x8xf32> to vector<2xf32>
    %20 = vector.shape_cast %19 : vector<2xf32> to vector<2x1xf32>
    %21 = vector.broadcast %20 : vector<2x1xf32> to vector<2x8xf32>
    %22 = arith.subf %18, %21 : vector<2x8xf32>
    %23 = math.exp %22 : vector<2x8xf32>
    %cst_13 = arith.constant dense<0.000000e+00> : vector<2xf32>
    %24 = vector.multi_reduction <add>, %23, %cst_13 [1] : vector<2x8xf32> to vector<2xf32>
    %25 = vector.shape_cast %24 : vector<2xf32> to vector<2x1xf32>
    %26 = vector.broadcast %25 : vector<2x1xf32> to vector<2x8xf32>
    %27 = arith.divf %23, %26 : vector<2x8xf32>
    %c0_14 = arith.constant 0 : index
    %c0_15 = arith.constant 0 : index
    %28 = vector.load %arg4[%c0_14, %c0_15] : memref<2x8xf32, #tpu.memory_space<vmem>>, vector<2x8xf32>
    %29 = arith.mulf %27, %28 : vector<2x8xf32>
    %c0_16 = arith.constant 0 : index
    %c0_17 = arith.constant 0 : index
    %30 = vector.load %arg9[%c0_16, %c0_17] : memref<2x8xf32, #tpu.memory_space<vmem>>, vector<2x8xf32>
    tpu.vector_store %arg9[%c0_16, %c0_17], %29 {strides = array<i32>} : memref<2x8xf32, #tpu.memory_space<vmem>>, vector<2x8xf32>,
    %31 = vector.shape_cast %29 : vector<2x8xf32> to vector<2x8x1xf32>
    %c0_18 = arith.constant 0 : index
    %c0_19 = arith.constant 0 : index
    %c0_20 = arith.constant 0 : index
    %32 = vector.load %arg5[%c0_18, %c0_19, %c0_20] : memref<2x8x32xf32, #tpu.memory_space<vmem>>, vector<2x8x32xf32>
    %33 = vector.broadcast %31 : vector<2x8x1xf32> to vector<2x8x32xf32>
    %34 = arith.mulf %33, %32 : vector<2x8x32xf32>
    %cst_21 = arith.constant dense<0.000000e+00> : vector<2x32xf32>
    %35 = vector.multi_reduction <add>, %34, %cst_21 [1] : vector<2x8x32xf32> to vector<2x32xf32>
    %c0_22 = arith.constant 0 : index
    %c0_23 = arith.constant 0 : index
    %36 = vector.load %arg10[%c0_22, %c0_23] : memref<2x32xf32, #tpu.memory_space<vmem>>, vector<2x32xf32>
    tpu.vector_store %arg10[%c0_22, %c0_23], %35 {strides = array<i32>} : memref<2x32xf32, #tpu.memory_space<vmem>>, vector<2x32xf32>,
    return
  }
  func.func @transform_0(%arg0: i32) -> (i32, i32) {
    %c0_i32 = arith.constant 0 : i32
    %c0_i32_0 = arith.constant 0 : i32
    return %arg0, %c0_i32 : i32, i32
  }
  func.func @transform_1(%arg0: i32) -> (i32, i32) {
    %c0_i32 = arith.constant 0 : i32
    %c0_i32_0 = arith.constant 0 : i32
    return %arg0, %c0_i32 : i32, i32
  }
  func.func @transform_2(%arg0: i32) -> (i32, i32) {
    %c0_i32 = arith.constant 0 : i32
    %c0_i32_0 = arith.constant 0 : i32
    return %arg0, %c0_i32 : i32, i32
  }
  func.func @transform_3(%arg0: i32) -> (i32, i32) {
    %c0_i32 = arith.constant 0 : i32
    %c0_i32_0 = arith.constant 0 : i32
    return %arg0, %c0_i32 : i32, i32
  }
  func.func @transform_4(%arg0: i32) -> (i32, i32, i32) {
    %c0_i32 = arith.constant 0 : i32
    %c0_i32_0 = arith.constant 0 : i32
    %c0_i32_1 = arith.constant 0 : i32
    return %arg0, %c0_i32, %c0_i32_0 : i32, i32, i32
  }
  func.func @transform_5(%arg0: i32) -> (i32, i32) {
    %c0_i32 = arith.constant 0 : i32
    %c0_i32_0 = arith.constant 0 : i32
    %c0_i32_1 = arith.constant 0 : i32
    return %c0_i32, %c0_i32_0 : i32, i32
  }
  func.func @transform_6(%arg0: i32) -> (i32, i32) {
    %c0_i32 = arith.constant 0 : i32
    %c0_i32_0 = arith.constant 0 : i32
    %c0_i32_1 = arith.constant 0 : i32
    return %c0_i32, %c0_i32_0 : i32, i32
  }
  func.func @transform_7(%arg0: i32) -> (i32, i32) {
    %c0_i32 = arith.constant 0 : i32
    %c0_i32_0 = arith.constant 0 : i32
    %c0_i32_1 = arith.constant 0 : i32
    return %c0_i32, %c0_i32_0 : i32, i32
  }
  func.func @transform_8(%arg0: i32) -> (i32, i32) {
    %c0_i32 = arith.constant 0 : i32
    %c0_i32_0 = arith.constant 0 : i32
    return %arg0, %c0_i32 : i32, i32
  }
  func.func @transform_9(%arg0: i32) -> (i32, i32) {
    %c0_i32 = arith.constant 0 : i32
    %c0_i32_0 = arith.constant 0 : i32
    return %arg0, %c0_i32 : i32, i32
  }
}

</mosaic_0001>

<llo_original>
// kernel: tpu_custom_call.1
$region0: #{tpu_custom_call.1}
  #allocation0 [shape = 'u32[]', space=smem, size = 0x4, offset = 0x4, fixed_abs, tag = 'smem constant byte address 0x4 - core index']
  #allocation1 [shape = 'u32[72,128]{1,0:T(1,128)}', space=vmem, size = 0x9000, scoped, tag = 'internal scratch']
  #allocation2 [shape = 'f32[1,1]{1,0:T(1,128)S(1)}', space=vmem, size = 0x200, scoped, tag = 'scoped memory for tpu_custom_call.1']
  %s0 = inlined_call_operand.hbm [shape: f32[16,32], index: 0, kind: input, shape index: {}]
  %s1 = inlined_call_operand.vmem [shape: f32[2,32], index: 1, kind: input, shape index: {}]
  %s2 = inlined_call_operand.hbm [shape: f32[2,8], index: 2, kind: input, shape index: {}]
  %s3 = inlined_call_operand.vmem [shape: f32[2,8], index: 3, kind: input, shape index: {}]
  %s4 = inlined_call_operand.hbm [shape: f32[2,8,32], index: 4, kind: input, shape index: {}]
  %s5 = inlined_call_operand.hbm [shape: f32[32,32], index: 5, kind: input, shape index: {}]
  %s6 = inlined_call_operand.vmem [shape: f32[1,32], index: 6, kind: input, shape index: {}]
  %s7 = inlined_call_operand.<no memory space> [shape: f32[1,1], index: 7, kind: input, shape index: {}]
  %s8 = inlined_call_operand.hbm [shape: f32[2,8], index: 8, kind: output, shape index: {0}]
  %s9 = inlined_call_operand.hbm [shape: f32[2,32], index: 9, kind: output, shape index: {1}]
  %10 = xla_tuple %s8, %s9
  %s11 = sld [smem:[#allocation0]]
  $region66: #{tpu_custom_call.1} parent=0
    _
  %s13 = ssub.s32 1, %s11
  %s14 = scalar_select 0, %s13, %s11
  %v15 = vstv %s7
  %16 = vst [vmem:[#allocation2] sm:$0x1] %v15
  $region1: #{tpu_custom_call.1} parent=0
    #allocation3 [shape = 'u8[8192]{0}', space=vmem, size = 0x2000, scoped, tag = 'input window, operand 0, single buffered']
    #allocation4 [shape = 's32[1]{0}', space=sflag, size = 0x4, scoped, tag = 'scoped memory for tpu_custom_call.1']
    #allocation5 [shape = 's32[1]{0}', space=sflag, size = 0x4, scoped, tag = 'scoped memory for tpu_custom_call.1']
    #allocation6 [shape = 'u8[1024]{0}', space=vmem, size = 0x400, scoped, tag = 'input window, operand 2, single buffered']
    #allocation7 [shape = 's32[1]{0}', space=sflag, size = 0x4, scoped, tag = 'scoped memory for tpu_custom_call.1']
    #allocation8 [shape = 'u8[8192]{0}', space=vmem, size = 0x2000, scoped, tag = 'input window, operand 4, single buffered']
    #allocation9 [shape = 'u8[16384]{0}', space=vmem, size = 0x4000, scoped, tag = 'input window, operand 5, single buffered']
    #allocation10 [shape = 's32[1]{0}', space=sflag, size = 0x4, scoped, tag = 'scoped memory for tpu_custom_call.1']
    #allocation11 [shape = 'u8[1024]{0}', space=vmem, size = 0x400, scoped, tag = 'output window, operand 0, single buffered']
    #allocation12 [shape = 'u8[1024]{0}', space=vmem, size = 0x400, scoped, tag = 'output window, operand 1, single buffered']
    #allocation13 [shape = 's32[1]{0}', space=sflag, size = 0x4, scoped, tag = 'scoped memory for tpu_custom_call.1']
    %17 = vsyncpa [#allocation4], 0
    %18 = vsyncpa [#allocation7], 0
    %19 = vsyncpa [#allocation10], 0
    %20 = vsyncpa [#allocation5], 0
    %21 = vsyncpa [#allocation13], 0
    // Predicated region
    $region2: #{tpu_custom_call.1} parent=1 // pred_check
      _
    $region3: #{tpu_custom_call.1} parent=1 // pred_check_branch
      %23 = sbr.rel (0) target = $region5
    $region4: #{tpu_custom_call.1} parent=1 // pred_region
      %25 = vsyncadd [#allocation4], 0
      %s26 = sshll.u32 %s0, 4
      %s27 = int_to_ptr.hbm [resolvable:$true] %s26
      %s28 = sshll.u32 [#allocation3], 4
      %s29 = int_to_ptr.vmem [resolvable:$true] %s28
      %34 = dma.hbm_to_vmem [thread:$0]  %s27, 256, %s29, [#allocation4], 128, 128, 8
    $region5: #{tpu_custom_call.1} parent=1 // pred_fallthru
      _
    // Predicated region
    $region6: #{tpu_custom_call.1} parent=1 // pred_check
      _
    $region7: #{tpu_custom_call.1} parent=1 // pred_check_branch
      %36 = sbr.rel (0) target = $region9
    $region8: #{tpu_custom_call.1} parent=1 // pred_region
      _
    $region9: #{tpu_custom_call.1} parent=1 // pred_fallthru
      _
    // Predicated region
    $region10: #{tpu_custom_call.1} parent=1 // pred_check
      _
    $region11: #{tpu_custom_call.1} parent=1 // pred_check_branch
      %38 = sbr.rel (0) target = $region13
    $region12: #{tpu_custom_call.1} parent=1 // pred_region
      %40 = vsyncadd [#allocation7], 0
      %s42 = sshll.u32 %s2, 4
      %s43 = int_to_ptr.hbm [resolvable:$true] %s42
      %s44 = sshll.u32 [#allocation6], 4
      %s45 = int_to_ptr.vmem [resolvable:$true] %s44
      %47 = dma.hbm_to_vmem [thread:$0]  %s43, 32, %s45, [#allocation7]
    $region13: #{tpu_custom_call.1} parent=1 // pred_fallthru
      _
    // Predicated region
    $region14: #{tpu_custom_call.1} parent=1 // pred_check
      _
    $region15: #{tpu_custom_call.1} parent=1 // pred_check_branch
      %49 = sbr.rel (0) target = $region17
    $region16: #{tpu_custom_call.1} parent=1 // pred_region
      _
    $region17: #{tpu_custom_call.1} parent=1 // pred_fallthru
      _
    // Predicated region
    $region18: #{tpu_custom_call.1} parent=1 // pred_check
      _
    $region19: #{tpu_custom_call.1} parent=1 // pred_check_branch
      %51 = sbr.rel (0) target = $region21
    $region20: #{tpu_custom_call.1} parent=1 // pred_region
      %53 = vsyncadd [#allocation7], 0
      %s54 = sshll.u32 %s4, 4
      %s55 = int_to_ptr.hbm [resolvable:$true] %s54
      %s56 = sshll.u32 [#allocation8], 4
      %s57 = int_to_ptr.vmem [resolvable:$true] %s56
      %62 = dma.hbm_to_vmem [thread:$0]  %s55, 256, %s57, [#allocation7], 128, 128, 8
    $region21: #{tpu_custom_call.1} parent=1 // pred_fallthru
      _
    // Predicated region
    $region22: #{tpu_custom_call.1} parent=1 // pred_check
      _
    $region23: #{tpu_custom_call.1} parent=1 // pred_check_branch
      %64 = sbr.rel (0) target = $region25
    $region24: #{tpu_custom_call.1} parent=1 // pred_region
      %66 = vsyncadd [#allocation10], 0
      %s67 = sshll.u32 %s5, 4
      %s68 = int_to_ptr.hbm [resolvable:$true] %s67
      %s69 = sshll.u32 [#allocation9], 4
      %s70 = int_to_ptr.vmem [resolvable:$true] %s69
      %75 = dma.hbm_to_vmem [thread:$0]  %s68, 512, %s70, [#allocation10], 128, 128, 8
    $region25: #{tpu_custom_call.1} parent=1 // pred_fallthru
      _
    // Predicated region
    $region26: #{tpu_custom_call.1} parent=1 // pred_check
      _
    $region27: #{tpu_custom_call.1} parent=1 // pred_check_branch
      %77 = sbr.rel (0) target = $region29
    $region28: #{tpu_custom_call.1} parent=1 // pred_region
      _
    $region29: #{tpu_custom_call.1} parent=1 // pred_fallthru
      _
    // Predicated region
    $region30: #{tpu_custom_call.1} parent=1 // pred_check
      _
    $region31: #{tpu_custom_call.1} parent=1 // pred_check_branch
      %79 = sbr.rel (0) target = $region33
    $region32: #{tpu_custom_call.1} parent=1 // pred_region
      _
    $region33: #{tpu_custom_call.1} parent=1 // pred_fallthru
      _
    // Predicated region
    $region34: #{tpu_custom_call.1} parent=1 // pred_check
      _
    $region35: #{tpu_custom_call.1} parent=1 // pred_check_branch
      %81 = sbr.rel (0) target = $region37
    $region36: #{tpu_custom_call.1} parent=1 // pred_region
      %83 = dma.done [#allocation4], 256
    $region37: #{tpu_custom_call.1} parent=1 // pred_fallthru
      _
    // Predicated region
    $region38: #{tpu_custom_call.1} parent=1 // pred_check
      _
    $region39: #{tpu_custom_call.1} parent=1 // pred_check_branch
      %85 = sbr.rel (0) target = $region41
    $region40: #{tpu_custom_call.1} parent=1 // pred_region
      %87 = dma.done [#allocation7], 32
    $region41: #{tpu_custom_call.1} parent=1 // pred_fallthru
      _
    // Predicated region
    $region42: #{tpu_custom_call.1} parent=1 // pred_check
      _
    $region43: #{tpu_custom_call.1} parent=1 // pred_check_branch
      %89 = sbr.rel (0) target = $region45
    $region44: #{tpu_custom_call.1} parent=1 // pred_region
      %91 = dma.done [#allocation7], 256
    $region45: #{tpu_custom_call.1} parent=1 // pred_fallthru
      _
    // Predicated region
    $region46: #{tpu_custom_call.1} parent=1 // pred_check
      _
    $region47: #{tpu_custom_call.1} parent=1 // pred_check_branch
      %93 = sbr.rel (0) target = $region49
    $region48: #{tpu_custom_call.1} parent=1 // pred_region
      %95 = dma.done [#allocation10], 512
    $region49: #{tpu_custom_call.1} parent=1 // pred_fallthru
      _
    %v96 = vld [vmem:[#allocation3] sm:$0xff]
    %v97 = vld [vmem:[#allocation3 + $0x8] sm:$0xff]
    %v98 = vld [vmem:[#allocation9] sm:$0xff]
    %v99 = vld [vmem:[#allocation9 + $0x8] sm:$0xff]
    %v100 = vld [vmem:[#allocation9 + $0x10] sm:$0xff]
    %v101 = vld [vmem:[#allocation9 + $0x18] sm:$0xff]
    %vm102 = vcmask 261120
    %v104 = vsel %vm102, %v96, 0
    %v107 = vsel %vm102, %v97, 0
    %109 = vmatpush.msra.mxu0 0.0
    %110 = vmatpush.msra.mxu0 0.0
    %111 = vmatpush.msra.mxu0 0.0
    %112 = vmatpush.msra.mxu0 0.0
    %113 = vmatpush.msra.mxu0 0.0
    %114 = vmatpush.msra.mxu0 0.0
    %115 = vmatpush.msra.mxu0 0.0
    %116 = vmatpush.msra.mxu0 0.0
    %117 = vmatpush.msra.mxu0 0.0
    %118 = vmatpush.msra.mxu0 0.0
    %119 = vmatpush.msra.mxu0 0.0
    %120 = vmatpush.msra.mxu0 0.0
    %121 = vmatpush.msra.mxu0 %v101
    %122 = vmatpush.msra.mxu0 %v100
    %123 = vmatpush.msra.mxu0 %v99
    %124 = vmatpush.msra.mxu0 %v98
    %125 = vmatmul.f32.gmra.mxu0 %v104
    %v126 = vpop.f32.mrf.mxu0
    %v127 = vadd.f32 0.0, %v126
    %128 = vmatmul.f32.gmra.mxu0 %v107
    %v129 = vpop.f32.mrf.mxu0
    %v130 = vadd.f32 0.0, %v129
    %131 = vdwg.mxu0
    %v132 = vld [vmem:[%s1] sm:$0x3]
    %v134 = vrot.slane %v132, 1
    %v135 = vperm.slane %v132, 0
    %v136 = vperm.slane %v134, 0
    %v139 = vadd.f32 %v127, %v135
    %v140 = vadd.f32 %v130, %v136
    %v141 = vtanh.pop %v139
    %v142 = vtanh.pop %v140
    %v143 = vld [vmem:[%s6] sm:$0x1]
    %v145 = vperm.slane %v143, 0
    %v147 = vmul.f32 %v141, %v145
    %v148 = vmul.f32 %v142, %v145
    %v149 = vsel %vm102, %v147, 0.0
    %150 = vadd.xlane.f32.xlu0 %v149
    %v151 = vpop.xlane.xlu0 %150
    %v152 = vsel %vm102, %v148, 0.0
    %153 = vadd.xlane.f32.xlu0 %v152
    %v154 = vpop.xlane.xlu0 %153
    %v155 = vld [vmem:[#allocation2] sm:$0x1]
    %v157 = vperm.slane %v155, 0
    %158 = vset.pattern.permute.xlu0 0
    %159 = vperm.xlu0 %158, %v157
    %v160 = vpop.permute.xlu0 %159
    %v162 = vadd.f32 %v151, %v160
    %v163 = vadd.f32 %v154, %v160
    %v164 = vld [vmem:[#allocation6] sm:$0x3]
    %v166 = vperm.slane %v164, 0
    %v167 = vlaneseq
    %v168 = vshrl.u32 %v167, 7
    %170 = vset.pattern.permute.xlu0 %v168
    %171 = vperm.xlu0 %170, %v166
    %v172 = vpop.permute.xlu0 %171
    %v173 = vperm.slane %v164, 1
    %v174 = vlaneseq
    %v175 = vshrl.u32 %v174, 7
    %177 = vset.pattern.permute.xlu0 %v175
    %178 = vperm.xlu0 %177, %v173
    %v179 = vpop.permute.xlu0 %178
    %v182 = vadd.f32 %v162, %v172
    %v183 = vadd.f32 %v163, %v179
    %186 = vset.pattern.permute.xlu0 0
    %187 = vperm.xlu0 %186, %v182
    %v188 = vpop.permute.xlu0 %187
    %189 = vset.pattern.permute.xlu0 0
    %190 = vperm.xlu0 %189, %v183
    %v191 = vpop.permute.xlu0 %190
    %v192 = vlaneseq
    %v193 = vand.u32 %v192, 127
    %v194 = vperm.slane %v188, %v193
    %v195 = vperm.slane %v191, %v193
    %vm196 = vcmask 1041409
    %v197 = vsel %vm196, %v195, %v194
    %vm199 = vcmask 58368
    %v200 = vsel %vm199, %v197, -inf
    %201 = vmax.xlane.f32.xlu0 %v200
    %v202 = vpop.xlane.xlu0 %201
    %v204 = vperm.slane %v202, 0
    %v205 = vperm.slane %v202, 1
    %v208 = vsub.f32 %v182, %v204
    %v209 = vsub.f32 %v183, %v205
    %v210 = vmul.f32 %v208, 1.442695
    %v211 = vpow.pop %v210
    %v212 = vmul.f32 %v209, 1.442695
    %v213 = vpow.pop %v212
    %216 = vset.pattern.permute.xlu0 0
    %217 = vperm.xlu0 %216, %v211
    %v218 = vpop.permute.xlu0 %217
    %219 = vset.pattern.permute.xlu0 0
    %220 = vperm.xlu0 %219, %v213
    %v221 = vpop.permute.xlu0 %220
    %v222 = vperm.slane %v218, %v193
    %v223 = vperm.slane %v221, %v193
    %v224 = vsel %vm196, %v223, %v222
    %v226 = vsel %vm199, %v224, 0.0
    %227 = vadd.xlane.f32.xlu0 %v226
    %v228 = vpop.xlane.xlu0 %227
    %v230 = vperm.slane %v228, 0
    %v231 = vperm.slane %v228, 1
    %v234 = vrcp.pop %v230
    %v235 = vmul.f32 %v230, %v234
    %v236 = vsub.f32 1.0, %v235
    %v237 = vmul.f32 %v234, %v236
    %v238 = vadd.f32 %v234, %v237
    %vm239 = vweird.f32 %v230
    %vm240 = vweird.f32 %v234
    %vm241 = vmor %vm239, %vm240
    %v242 = vsel %vm241, %v234, %v238
    %v243 = vand.u32 2147483647, %v230
    %vm244 = vcmp.eq.f32.partialorder %v243, 8.507059e+37
    %v245 = vand.u32 %v230, 2147483648
    %v246 = vor.u32 1.1754944e-38, %v245
    %v247 = vsel %vm244, %v246, %v242
    %v248 = vmul.f32 %v211, %v247
    %v249 = vrcp.pop %v231
    %v250 = vmul.f32 %v231, %v249
    %v251 = vsub.f32 1.0, %v250
    %v252 = vmul.f32 %v249, %v251
    %v253 = vadd.f32 %v249, %v252
    %vm254 = vweird.f32 %v231
    %vm255 = vweird.f32 %v249
    %vm256 = vmor %vm254, %vm255
    %v257 = vsel %vm256, %v249, %v253
    %v258 = vand.u32 2147483647, %v231
    %vm259 = vcmp.eq.f32.partialorder %v258, 8.507059e+37
    %v260 = vand.u32 %v231, 2147483648
    %v261 = vor.u32 1.1754944e-38, %v260
    %v262 = vsel %vm259, %v261, %v257
    %v263 = vmul.f32 %v213, %v262
    %v264 = vld [vmem:[%s3] sm:$0x3]
    %v266 = vperm.slane %v264, 0
    %v267 = vlaneseq
    %v268 = vshrl.u32 %v267, 7
    %270 = vset.pattern.permute.xlu0 %v268
    %271 = vperm.xlu0 %270, %v266
    %v272 = vpop.permute.xlu0 %271
    %v273 = vperm.slane %v264, 1
    %v274 = vlaneseq
    %v275 = vshrl.u32 %v274, 7
    %277 = vset.pattern.permute.xlu0 %v275
    %278 = vperm.xlu0 %277, %v273
    %v279 = vpop.permute.xlu0 %278
    %v282 = vmul.f32 %v248, %v272
    %v283 = vmul.f32 %v263, %v279
    %286 = vset.pattern.permute.xlu0 0
    %287 = vperm.xlu0 %286, %v282
    %v288 = vpop.permute.xlu0 %287
    %289 = vset.pattern.permute.xlu0 0
    %290 = vperm.xlu0 %289, %v283
    %v291 = vpop.permute.xlu0 %290
    %v292 = vperm.slane %v288, %v193
    %v293 = vperm.slane %v291, %v193
    %v294 = vsel %vm196, %v293, %v292
    %296 = vst.msk [vmem:[#allocation11] sm:$0x3] %vm199, %v294
    %v297 = vld [vmem:[#allocation8] sm:$0xff]
    %v298 = vld [vmem:[#allocation8 + $0x8] sm:$0xff]
    %v301 = vmul.f32 %v288, %v297
    %v302 = vmul.f32 %v291, %v298
    %v303 = vsel %vm102, %v301, 0.0
    %v304 = vrot.slane %v303, 4
    %v305 = vadd.f32 %v303, %v304
    %v306 = vrot.slane %v305, 2
    %v307 = vadd.f32 %v305, %v306
    %v308 = vrot.slane %v307, 1
    %v309 = vadd.f32 %v307, %v308
    %v310 = vsel %vm102, %v302, 0.0
    %v311 = vrot.slane %v310, 4
    %v312 = vadd.f32 %v310, %v311
    %v313 = vrot.slane %v312, 2
    %v314 = vadd.f32 %v312, %v313
    %v315 = vrot.slane %v314, 1
    %v316 = vadd.f32 %v314, %v315
    %v319 = vsel %vm196, %v316, %v309
    %vm321 = vcmask 254976
    %322 = vst.msk [vmem:[#allocation12] sm:$0x3] %vm321, %v319
    // Predicated region
    $region50: #{tpu_custom_call.1} parent=1 // pred_check
      _
    $region51: #{tpu_custom_call.1} parent=1 // pred_check_branch
      %324 = sbr.rel (0) target = $region53
    $region52: #{tpu_custom_call.1} parent=1 // pred_region
      %326 = vsyncadd [#allocation5], 0
      %s328 = sshll.u32 [#allocation11], 4
      %s329 = int_to_ptr.vmem [resolvable:$true] %s328
      %s330 = sshll.u32 %s8, 4
      %s331 = int_to_ptr.hbm [resolvable:$true] %s330
      %333 = dma.vmem_to_hbm [thread:$0]  %s329, 32, %s331, [#allocation5]
    $region53: #{tpu_custom_call.1} parent=1 // pred_fallthru
      _
    // Predicated region
    $region54: #{tpu_custom_call.1} parent=1 // pred_check
      _
    $region55: #{tpu_custom_call.1} parent=1 // pred_check_branch
      %335 = sbr.rel (0) target = $region57
    $region56: #{tpu_custom_call.1} parent=1 // pred_region
      %337 = vsyncadd [#allocation13], 0
      %s339 = sshll.u32 [#allocation12], 4
      %s340 = int_to_ptr.vmem [resolvable:$true] %s339
      %s341 = sshll.u32 %s9, 4
      %s342 = int_to_ptr.hbm [resolvable:$true] %s341
      %344 = dma.vmem_to_hbm [thread:$0]  %s340, 32, %s342, [#allocation13]
    $region57: #{tpu_custom_call.1} parent=1 // pred_fallthru
      _
    // Predicated region
    $region58: #{tpu_custom_call.1} parent=1 // pred_check
      _
    $region59: #{tpu_custom_call.1} parent=1 // pred_check_branch
      %346 = sbr.rel (0) target = $region61
    $region60: #{tpu_custom_call.1} parent=1 // pred_region
      %348 = dma.done [#allocation5], 32
    $region61: #{tpu_custom_call.1} parent=1 // pred_fallthru
      _
    // Predicated region
    $region62: #{tpu_custom_call.1} parent=1 // pred_check
      _
    $region63: #{tpu_custom_call.1} parent=1 // pred_check_branch
      %350 = sbr.rel (0) target = $region65
    $region64: #{tpu_custom_call.1} parent=1 // pred_region
      %352 = dma.done [#allocation13], 32
    $region65: #{tpu_custom_call.1} parent=1 // pred_fallthru
      _
    %353 = vsyncpa [#allocation4], 1
    %354 = vsyncpa [#allocation7], 1
    %355 = vsyncpa [#allocation10], 1
    %356 = vsyncpa [#allocation5], 1
    %357 = vsyncpa [#allocation13], 1

</llo_original>
